<compile_context>
chip_gen: v7x
topology: tpu7x:2x2x1
jax: 0.10.0
libtpu: 0.0.40
codegen_flags: <defaults>
</compile_context>

<pallas_src>
import functools

import jax
import jax.numpy as jnp
from jax.experimental import pallas as pl
from jax.experimental.pallas import tpu as pltpu


def make_rope_params(dim: int, max_seq_len: int, base: float = 10000.0):
    """Deterministically build the cos/sin tables (same math as the nn.Module)."""
    inv_freq = 1.0 / (base ** (jnp.arange(0, dim, 2, dtype=jnp.float32) / dim))
    inv_freq = inv_freq[: dim // 2]
    t = jnp.arange(max_seq_len, dtype=jnp.float32)
    freqs = jnp.outer(t, inv_freq).astype(jnp.float32)  # (max_seq_len, dim//2)
    return jnp.cos(freqs), jnp.sin(freqs)


def _rope_kernel(cos_ref, sin_ref, x_ref, o_ref):
    # cos_ref: (tS, W) interleaved cos, tiled over folded heads
    # sin_ref: (tS, W) interleaved, pre-signed  [-s0, +s0, -s1, +s1, ...]
    # x_ref / o_ref: (1, tS, H//g, W) with W = g*D (lane-dense last dim)
    x = x_ref[...]
    W = x.shape[-1]

    # Pair swap on the lane axis: swap[2i] = x[2i+1], swap[2i+1] = x[2i].
    # XLU rolls are free filler for this HBM-bound kernel.  The wrap-around
    # lanes (and head-chunk boundaries) are never selected by the parity mask.
    r_prev = pltpu.roll(x, 1, 3)       # out[j] = x[j-1]
    r_next = pltpu.roll(x, W - 1, 3)   # out[j] = x[j+1]  (shift of -1 mod W)

    # Tiny (1,1,1,W) parity mask; jnp.where broadcasts it over the block.
    lane = jax.lax.broadcasted_iota(jnp.int32, (1, 1, 1, W), 3)
    x_swap = jnp.where((lane & 1) == 0, r_next, r_prev)

    cos = cos_ref[...][None, :, None, :]  # (1, tS, 1, W) - sublane broadcast
    sin = sin_ref[...][None, :, None, :]

    o_ref[...] = (cos * x + sin * x_swap).astype(o_ref.dtype)


def _choose_head_fold(H: int, D: int) -> int:
    """Number of heads g (dividing H) folded into the lane axis so the fused
    last dim g*D is lane-dense (ideally a multiple of 128)."""
    if D % 128 == 0:
        return 1
    best = 1
    for g in range(1, H + 1):
        if H % g != 0:
            continue
        w = g * D
        if w > 1024:
            break
        if w % 128 == 0:
            return g          # smallest fold reaching a full-lane multiple
        if w <= 128:
            best = g          # best effort when no multiple of 128 exists
    return best


def _choose_seq_tile(S: int, row_bytes: int, target_bytes: int = 4 * 1024 * 1024) -> int:
    """Sequence tile: multiple of 8 (layout rule for the (tS, W) table blocks),
    sized so one x block is <= ~4 MiB.  It need NOT divide S -- the grid uses
    pl.cdiv and Pallas masks the tail block (no giant-fallback VMEM blowup)."""
    if S * row_bytes <= target_bytes:
        return S  # full sequence in one block (full-dim block is always legal)
    t = int(target_bytes // max(row_bytes, 1))
    t = max(8, t - t % 8)
    return min(t, S)


@functools.partial(jax.jit, static_argnames=("donate_x",))
def rope_forward(x, cos_full, sin_full, offset=0, *, donate_x: bool = False):
    B, S, H, D = x.shape
    max_seq_len = cos_full.shape[0]
    assert D % 2 == 0, "rotated feature dim must be even"
    if isinstance(offset, int):
        # NOTE: original module asserts `<` (off by one); full-length window is valid.
        assert offset + S <= max_seq_len, "sequence (+offset) exceeds max_seq_len"

    # --- tiny wrapper-side table prep (a few hundred KiB at most) ------------
    offset = jnp.asarray(offset, jnp.int32)  # traced: no recompile per decode step
    cos = jax.lax.dynamic_slice_in_dim(cos_full, offset, S, axis=0)  # (S, D//2)
    sin = jax.lax.dynamic_slice_in_dim(sin_full, offset, S, axis=0)  # (S, D//2)

    # Interleave to full D and fold the rotation sign into the sin table:
    #   out[2i]   = cos_i * x[2i]   - sin_i * x[2i+1]
    #   out[2i+1] = cos_i * x[2i+1] + sin_i * x[2i]
    # i.e. out = cos_il * x + sin_il * pair_swap(x).
    cos_il = jnp.repeat(cos, 2, axis=-1)                                  # (S, D)
    sign = jnp.where(jnp.arange(D) % 2 == 0, -1.0, 1.0).astype(jnp.float32)
    sin_il = jnp.repeat(sin, 2, axis=-1) * sign                           # (S, D)

    # Fold g heads into the lane axis so the output store is lane-dense.
    g = _choose_head_fold(H, D)
    Hg, W = H // g, g * D
    x_f = x.reshape(B, S, Hg, W)          # contiguous reshape, free
    if g > 1:
        cos_il = jnp.tile(cos_il, (1, g))  # (S, W)
        sin_il = jnp.tile(sin_il, (1, g))

    # bf16 tables when activations are bf16 (bf16-native VALU on v6e/v7x);
    # f32 tables otherwise (matches the f32 PyTorch parameters / v5e path).
    table_dtype = jnp.bfloat16 if x.dtype == jnp.bfloat16 else jnp.float32
    cos_il = cos_il.astype(table_dtype)
    sin_il = sin_il.astype(table_dtype)

    itemsize = jnp.dtype(x.dtype).itemsize
    table_itemsize = jnp.dtype(table_dtype).itemsize
    row_bytes = Hg * W * itemsize
    tS = _choose_seq_tile(S, row_bytes)
    grid = (pl.cdiv(S, tS), B)            # B innermost: cos/sin blocks stay resident

    block_bytes = tS * Hg * W * itemsize
    table_block_bytes = tS * W * table_itemsize
    # 2x in + 2x out double-buffered blocks + double-buffered tables + headroom.
    vmem_limit = 4 * block_bytes + 4 * table_block_bytes + 8 * 1024 * 1024
    vmem_limit = int(min(max(vmem_limit, 16 * 1024 * 1024), 48 * 1024 * 1024))

    cost = pl.CostEstimate(
        flops=3 * B * S * H * D,
        transcendentals=0,
        bytes_accessed=2 * B * S * H * D * itemsize + 2 * S * W * table_itemsize,
    )

    out = pl.pallas_call(
        _rope_kernel,
        out_shape=jax.ShapeDtypeStruct((B, S, Hg, W), x.dtype),
        grid_spec=pltpu.PrefetchScalarGridSpec(
            num_scalar_prefetch=0,
            grid=grid,
            in_specs=[
                pl.BlockSpec((tS, W), lambda s, b: (s, 0)),              # cos_il
                pl.BlockSpec((tS, W), lambda s, b: (s, 0)),              # sin_il
                pl.BlockSpec((1, tS, Hg, W), lambda s, b: (b, s, 0, 0)),  # x
            ],
            out_specs=pl.BlockSpec((1, tS, Hg, W), lambda s, b: (b, s, 0, 0)),
        ),
        compiler_params=pltpu.CompilerParams(
            dimension_semantics=("parallel", "parallel"),
            vmem_limit_bytes=vmem_limit,
        ),
        cost_estimate=cost,
        input_output_aliases=({2: 0} if donate_x else {}),
    )(cos_il, sin_il, x_f)

    return out.reshape(B, S, H, D)


def rope_reference(x, cos_full, sin_full, offset: int = 0):
    """Pure-JAX reference mirroring the PyTorch forward, for verification."""
    S = x.shape[1]
    cos = cos_full[offset:offset + S][None, :, None, :]
    sin = sin_full[offset:offset + S][None, :, None, :]
    xe = x[..., ::2]
    xo = x[..., 1::2]
    x0 = cos * xe - sin * xo
    x1 = sin * xe + cos * xo
    out = jnp.concatenate([x0[..., None], x1[..., None]], axis=-1)
    return out.reshape(*out.shape[:-2], -1).astype(x.dtype)


if __name__ == "__main__":
    # Small shapes consistent with the module: (batch, seq, heads, head_dim)
    B, S, H, D = 2, 8, 4, 32
    MAX_SEQ_LEN = 16

    key = jax.random.PRNGKey(0)
    x = jax.random.normal(key, (B, S, H, D), dtype=jnp.float32)

    cos_full, sin_full = make_rope_params(dim=D, max_seq_len=MAX_SEQ_LEN)

    # offset = 0
    out = rope_forward(x, cos_full, sin_full, 0)
    out = jax.block_until_ready(out)
    ref = rope_reference(x, cos_full, sin_full, 0)
    assert out.shape == x.shape and out.dtype == x.dtype
    assert jnp.allclose(out, ref, atol=1e-5, rtol=1e-5), "mismatch vs reference (offset=0)"

    # dynamic offset (same compiled kernel, no retrace)
    out5 = jax.block_until_ready(rope_forward(x, cos_full, sin_full, 5))
    ref5 = rope_reference(x, cos_full, sin_full, 5)
    assert jnp.allclose(out5, ref5, atol=1e-5, rtol=1e-5), "mismatch vs reference (offset=5)"

    print("KERNEL_OK")
</pallas_src>

<mosaic_0001>
module attributes {stable_mosaic.version = 11 : i64} {
  func.func @_rope_kernel(%arg0: i32, %arg1: i32, %arg2: memref<8x128xf32, #tpu.memory_space<vmem>>, %arg3: memref<8x128xf32, #tpu.memory_space<vmem>>, %arg4: memref<1x8x1x128xf32, #tpu.memory_space<vmem>>, %arg5: memref<1x8x1x128xf32, #tpu.memory_space<vmem>>) attributes {dimension_semantics = [#tpu.dimension_semantics<parallel>, #tpu.dimension_semantics<parallel>], iteration_bounds = array<i64: 1, 2>, scalar_prefetch = 0 : i64, scratch_operands = 0 : i64, tpu.core_type = #tpu.core_type<tc>, window_params = [{transform_indices = @transform_0, window_bounds = array<i64: 8, 128>}, {transform_indices = @transform_1, window_bounds = array<i64: 8, 128>}, {transform_indices = @transform_2, window_bounds = array<i64: 1, 8, 1, 128>}, {transform_indices = @transform_3, window_bounds = array<i64: 1, 8, 1, 128>}]} {
    %c0 = arith.constant 0 : index
    %c0_0 = arith.constant 0 : index
    %c0_1 = arith.constant 0 : index
    %c0_2 = arith.constant 0 : index
    %0 = vector.load %arg4[%c0, %c0_0, %c0_1, %c0_2] : memref<1x8x1x128xf32, #tpu.memory_space<vmem>>, vector<1x8x1x128xf32>
    %c1_i32 = arith.constant 1 : i32
    %1 = tpu.dynamic_rotate %0 by %c1_i32 dim 3 : vector<1x8x1x128xf32>, i32 -> vector<1x8x1x128xf32>
    %c127_i32 = arith.constant 127 : i32
    %2 = tpu.dynamic_rotate %0 by %c127_i32 dim 3 : vector<1x8x1x128xf32>, i32 -> vector<1x8x1x128xf32>
    %3 = tpu.iota {dimensions = array<i32: 3>} : vector<1x1x1x128xi32>
    %c1_i32_3 = arith.constant 1 : i32
    %4 = vector.broadcast %c1_i32_3 : i32 to vector<1x1x1x128xi32>
    %5 = arith.andi %3, %4 : vector<1x1x1x128xi32>
    %c0_i32 = arith.constant 0 : i32
    %6 = vector.broadcast %c0_i32 : i32 to vector<1x1x1x128xi32>
    %7 = arith.cmpi eq, %5, %6 : vector<1x1x1x128xi32>
    %8 = vector.shape_cast %7 : vector<1x1x1x128xi1> to vector<1x1x1x128xi1>
    %9 = vector.broadcast %8 : vector<1x1x1x128xi1> to vector<1x8x1x128xi1>
    %10 = arith.select %9, %2, %1 : vector<1x8x1x128xi1>, vector<1x8x1x128xf32>
    %c0_4 = arith.constant 0 : index
    %c0_5 = arith.constant 0 : index
    %11 = vector.load %arg2[%c0_4, %c0_5] : memref<8x128xf32, #tpu.memory_space<vmem>>, vector<8x128xf32>
    %12 = vector.shape_cast %11 : vector<8x128xf32> to vector<1x8x1x128xf32>
    %c0_6 = arith.constant 0 : index
    %c0_7 = arith.constant 0 : index
    %13 = vector.load %arg3[%c0_6, %c0_7] : memref<8x128xf32, #tpu.memory_space<vmem>>, vector<8x128xf32>
    %14 = vector.shape_cast %13 : vector<8x128xf32> to vector<1x8x1x128xf32>
    %15 = arith.mulf %12, %0 : vector<1x8x1x128xf32>
    %16 = arith.mulf %14, %10 : vector<1x8x1x128xf32>
    %17 = arith.addf %15, %16 : vector<1x8x1x128xf32>
    %c0_8 = arith.constant 0 : index
    %c0_9 = arith.constant 0 : index
    %c0_10 = arith.constant 0 : index
    %c0_11 = arith.constant 0 : index
    %18 = vector.load %arg5[%c0_8, %c0_9, %c0_10, %c0_11] : memref<1x8x1x128xf32, #tpu.memory_space<vmem>>, vector<1x8x1x128xf32>
    tpu.vector_store %arg5[%c0_8, %c0_9, %c0_10, %c0_11], %17 {strides = array<i32>} : memref<1x8x1x128xf32, #tpu.memory_space<vmem>>, vector<1x8x1x128xf32>,
    return
  }
  func.func @transform_0(%arg0: i32, %arg1: i32) -> (i32, i32) {
    %c0_i32 = arith.constant 0 : i32
    %c0_i32_0 = arith.constant 0 : i32
    return %arg0, %c0_i32 : i32, i32
  }
  func.func @transform_1(%arg0: i32, %arg1: i32) -> (i32, i32) {
    %c0_i32 = arith.constant 0 : i32
    %c0_i32_0 = arith.constant 0 : i32
    return %arg0, %c0_i32 : i32, i32
  }
  func.func @transform_2(%arg0: i32, %arg1: i32) -> (i32, i32, i32, i32) {
    %c0_i32 = arith.constant 0 : i32
    %c0_i32_0 = arith.constant 0 : i32
    %c0_i32_1 = arith.constant 0 : i32
    return %arg1, %arg0, %c0_i32, %c0_i32_0 : i32, i32, i32, i32
  }
  func.func @transform_3(%arg0: i32, %arg1: i32) -> (i32, i32, i32, i32) {
    %c0_i32 = arith.constant 0 : i32
    %c0_i32_0 = arith.constant 0 : i32
    %c0_i32_1 = arith.constant 0 : i32
    return %arg1, %arg0, %c0_i32, %c0_i32_0 : i32, i32, i32, i32
  }
}

</mosaic_0001>

<llo_original>
// kernel: tile.12
$region0: #{tile.12}
  %s0 = inlined_call_operand.vmem [shape: f32[8,4,32], index: 0, kind: input, shape index: {}]
  %s1 = inlined_call_operand.vmem [shape: f32[8,128], index: 1, kind: output, shape index: {}]
  $region1: #{tile.12} parent=0
    #allocation0 [shape = 'u8[32768]{0}', space=vmem, size = 0x8000, scoped, tag = 'scoped mem for input reshape']
    %s3 = sshllo.u32 0, 4
    %s4 = smul.addr 4, 7
    %s5 = scalar_lea.vmem %s0, %s4
    %v6 = vld [vmem:[%s5] sm:%s3]
    %s7 = scalar_lea.vmem [#allocation0], 56
    %8 = vst [vmem:[%s7] sm:%s3] %v6
    %s9 = smul.addr 4, 6
    %s10 = scalar_lea.vmem %s0, %s9
    %v11 = vld [vmem:[%s10] sm:%s3]
    %s12 = scalar_lea.vmem [#allocation0], 48
    %13 = vst [vmem:[%s12] sm:%s3] %v11
    %s14 = smul.addr 4, 5
    %s15 = scalar_lea.vmem %s0, %s14
    %v16 = vld [vmem:[%s15] sm:%s3]
    %s17 = scalar_lea.vmem [#allocation0], 40
    %18 = vst [vmem:[%s17] sm:%s3] %v16
    %s19 = smul.addr 4, 4
    %s20 = scalar_lea.vmem %s0, %s19
    %v21 = vld [vmem:[%s20] sm:%s3]
    %s22 = scalar_lea.vmem [#allocation0], 32
    %23 = vst [vmem:[%s22] sm:%s3] %v21
    %s24 = smul.addr 4, 3
    %s25 = scalar_lea.vmem %s0, %s24
    %v26 = vld [vmem:[%s25] sm:%s3]
    %s27 = scalar_lea.vmem [#allocation0], 24
    %28 = vst [vmem:[%s27] sm:%s3] %v26
    %s29 = smul.addr 4, 2
    %s30 = scalar_lea.vmem %s0, %s29
    %v31 = vld [vmem:[%s30] sm:%s3]
    %s32 = scalar_lea.vmem [#allocation0], 16
    %33 = vst [vmem:[%s32] sm:%s3] %v31
    %s34 = scalar_lea.vmem %s0, 4
    %v35 = vld [vmem:[%s34] sm:%s3]
    %s36 = scalar_lea.vmem [#allocation0], 8
    %37 = vst [vmem:[%s36] sm:%s3] %v35
    %v38 = vld [vmem:[%s0] sm:%s3]
    %39 = vst [vmem:[#allocation0] sm:%s3] %v38
    %v40 = vld [vmem:[#allocation0] ss:$8 sm:$0xf]
    %v41 = vld [vmem:[#allocation0] ss:$8 sm:$0xf0]
    %vm42 = vcmask 1047556
    %v43 = vsel %vm42, %v41, %v40
    %vm44 = vcmask 261120
    %45 = vst.msk [vmem:[%s1] sm:$0xff] %vm44, %v43
    %s46 = scalar_lea.vmem [#allocation0], 3
    %v47 = vld [vmem:[%s46] ss:$8 sm:$0xf]
    %s48 = scalar_lea.vmem [#allocation0], 3
    %v49 = vld [vmem:[%s48] ss:$8 sm:$0xf0]
    %vm50 = vcmask 1047556
    %v51 = vsel %vm50, %v49, %v47
    %52 = vrot.lane.b32.xlu0 %v51, 96
    %v53 = vpop.permute.xlu0 %52
    %vm54 = vcmask 1048320
    %55 = vst.msk [vmem:[%s1] sm:$0xff] %vm54, %v53
    %s56 = scalar_lea.vmem [#allocation0], 2
    %v57 = vld [vmem:[%s56] ss:$8 sm:$0xf]
    %s58 = scalar_lea.vmem [#allocation0], 2
    %v59 = vld [vmem:[%s58] ss:$8 sm:$0xf0]
    %vm60 = vcmask 1047556
    %v61 = vsel %vm60, %v59, %v57
    %62 = vrot.lane.b32.xlu0 %v61, 64
    %v63 = vpop.permute.xlu0 %62
    %vm64 = vcmask 785920
    %65 = vst.msk [vmem:[%s1] sm:$0xff] %vm64, %v63
    %s66 = scalar_lea.vmem [#allocation0], 1
    %v67 = vld [vmem:[%s66] ss:$8 sm:$0xf]
    %s68 = scalar_lea.vmem [#allocation0], 1
    %v69 = vld [vmem:[%s68] ss:$8 sm:$0xf0]
    %vm70 = vcmask 1047556
    %v71 = vsel %vm70, %v69, %v67
    %72 = vrot.lane.b32.xlu0 %v71, 32
    %v73 = vpop.permute.xlu0 %72
    %vm74 = vcmask 523520
    %75 = vst.msk [vmem:[%s1] sm:$0xff] %vm74, %v73

// kernel: rope_forward.1
$region0: #{rope_forward.1}
  #allocation0 [shape = 'u32[]', space=smem, size = 0x4, offset = 0x4, fixed_abs, tag = 'smem constant byte address 0x4 - core index']
  #allocation1 [shape = 'u32[144,128]{1,0:T(1,128)}', space=vmem, size = 0x12000, scoped, tag = 'internal scratch']
  %s0 = inlined_call_operand.vmem [shape: f32[8,128], index: 0, kind: input, shape index: {}]
  %s1 = inlined_call_operand.vmem [shape: f32[8,128], index: 1, kind: input, shape index: {}]
  %s2 = inlined_call_operand.vmem [shape: f32[2,8,1,128], index: 2, kind: input, shape index: {}]
  %s3 = inlined_call_operand.vmem [shape: f32[2,8,1,128], index: 3, kind: output, shape index: {}]
  %s4 = sld [smem:[#allocation0]]
  $region45: #{rope_forward.1} parent=0
    _
  %s6 = ssub.s32 1, %s4
  %s7 = scalar_select 0, %s6, %s4
  loop: start=0, step=1, limit=4
  $region2: #{rope_forward.1} parent=0 // loop_pre_header
    _
  $region3: #{rope_forward.1} parent=0 // loop_header
    %s9 = sphi 0, %s13
    %p10 = scmp.ge.s32.totalorder %s9, 4
    %s16 = sphi 0, %s28
    %s17 = sphi 0, %s24
    %s18 = sphi 0, %s16
    %s19 = sphi 0, %s17
    %s20 = sphi 0, %s18
    %s21 = sphi 0, %s19
    %s31 = sphi 0, %s33
    %s34 = sphi 0, %s31
    %s35 = sphi 0, %s34
    %s51 = sphi 0, %s35
    %s57 = sphi 0, %s59
    %s60 = sphi 0, %s57
    %s61 = sphi 0, %s60
    %s77 = sphi 0, %s61
    %s85 = sphi 0, %s87
    %s88 = sphi 0, %s85
    %s89 = sphi 0, %s88
    %s105 = sphi 0, %s89
    %s113 = sphi 0, %s115
    %s116 = sphi 0, %s113
    %s117 = sphi 0, %s116
    %s133 = sphi 0, %s117
  $region4: #{rope_forward.1} parent=0 // loop_header_branch
    %12 = sbr.rel (%p10) target = $region8
  $region5: #{rope_forward.1} parent=0 // loop_body
    %s14 = ssub.s32 %s9, 1
    %s15 = ssub.s32 %s9, 2
    %s22 = sadd.s32 1, %s17
    %p23 = scmp.ge.s32.totalorder %s22, 2
    %s24 = scalar_select %p23, 0, %s22
    %s25 = sadd.s32 1, %s16
    %s26 = scalar_select %p23, %s25, %s16
    %p27 = scmp.ge.s32.totalorder %s26, 1
    %s28 = scalar_select %p27, 0, %s26
    %s29 = ssub.s32 %s16, %s28
    %p30 = scmp.eq.s32.totalorder %s29, 0
    %s32 = sadd.s32 %s31, 1
    %s33 = scalar_select %p30, %s31, %s32
    %p36 = pneg %p30
    %p37 = scmp.eq.s32.totalorder %s9, 1
    %p38 = por %p36, %p37
    %p39 = scmp.ne.s32.totalorder %s31, %s34
    %p40 = scmp.eq.s32.totalorder %s9, 0
    %p41 = por %p39, %p40
    %p42 = scmp.ne.s32.totalorder %s31, %s34
    %p43 = scmp.eq.s32.totalorder %s14, 1
    %p44 = por %p42, %p43
    %p45 = scmp.ne.s32.totalorder %s34, %s35
    %p46 = scmp.eq.s32.totalorder %s14, 0
    %p47 = por %p45, %p46
    %p48 = scmp.ne.s32.totalorder %s34, %s35
    %p49 = scmp.eq.s32.totalorder %s15, 1
    %p50 = por %p48, %p49
    %p52 = scmp.ne.s32.totalorder %s35, %s51
    %p53 = scmp.eq.s32.totalorder %s15, 0
    %p54 = por %p52, %p53
    %s55 = ssub.s32 %s16, %s28
    %p56 = scmp.eq.s32.totalorder %s55, 0
    %s58 = sadd.s32 %s57, 1
    %s59 = scalar_select %p56, %s57, %s58
    %p62 = pneg %p56
    %p63 = scmp.eq.s32.totalorder %s9, 1
    %p64 = por %p62, %p63
    %p65 = scmp.ne.s32.totalorder %s57, %s60
    %p66 = scmp.eq.s32.totalorder %s9, 0
    %p67 = por %p65, %p66
    %p68 = scmp.ne.s32.totalorder %s57, %s60
    %p69 = scmp.eq.s32.totalorder %s14, 1
    %p70 = por %p68, %p69
    %p71 = scmp.ne.s32.totalorder %s60, %s61
    %p72 = scmp.eq.s32.totalorder %s14, 0
    %p73 = por %p71, %p72
    %p74 = scmp.ne.s32.totalorder %s60, %s61
    %p75 = scmp.eq.s32.totalorder %s15, 1
    %p76 = por %p74, %p75
    %p78 = scmp.ne.s32.totalorder %s61, %s77
    %p79 = scmp.eq.s32.totalorder %s15, 0
    %p80 = por %p78, %p79
    %s81 = ssub.s32 %s17, %s24
    %s82 = ssub.s32 %s16, %s28
    %s83 = sor.u32 %s81, %s82
    %p84 = scmp.eq.s32.totalorder %s83, 0
    %s86 = sadd.s32 %s85, 1
    %s87 = scalar_select %p84, %s85, %s86
    %p90 = pneg %p84
    %p91 = scmp.eq.s32.totalorder %s9, 1
    %p92 = por %p90, %p91
    %p93 = scmp.ne.s32.totalorder %s85, %s88
    %p94 = scmp.eq.s32.totalorder %s9, 0
    %p95 = por %p93, %p94
    %p96 = scmp.ne.s32.totalorder %s85, %s88
    %p97 = scmp.eq.s32.totalorder %s14, 1
    %p98 = por %p96, %p97
    %p99 = scmp.ne.s32.totalorder %s88, %s89
    %p100 = scmp.eq.s32.totalorder %s14, 0
    %p101 = por %p99, %p100
    %p102 = scmp.ne.s32.totalorder %s88, %s89
    %p103 = scmp.eq.s32.totalorder %s15, 1
    %p104 = por %p102, %p103
    %p106 = scmp.ne.s32.totalorder %s89, %s105
    %p107 = scmp.eq.s32.totalorder %s15, 0
    %p108 = por %p106, %p107
    %s109 = ssub.s32 %s17, %s24
    %s110 = ssub.s32 %s16, %s28
    %s111 = sor.u32 %s109, %s110
    %p112 = scmp.eq.s32.totalorder %s111, 0
    %s114 = sadd.s32 %s113, 1
    %s115 = scalar_select %p112, %s113, %s114
    %p118 = pneg %p112
    %p119 = scmp.eq.s32.totalorder %s9, 1
    %p120 = por %p118, %p119
    %p121 = scmp.ne.s32.totalorder %s113, %s116
    %p122 = scmp.eq.s32.totalorder %s9, 0
    %p123 = por %p121, %p122
    %p124 = scmp.ne.s32.totalorder %s113, %s116
    %p125 = scmp.eq.s32.totalorder %s14, 1
    %p126 = por %p124, %p125
    %p127 = scmp.ne.s32.totalorder %s116, %s117
    %p128 = scmp.eq.s32.totalorder %s14, 0
    %p129 = por %p127, %p128
    %p130 = scmp.ne.s32.totalorder %s116, %s117
    %p131 = scmp.eq.s32.totalorder %s15, 1
    %p132 = por %p130, %p131
    %p134 = scmp.ne.s32.totalorder %s117, %s133
    %p135 = scmp.eq.s32.totalorder %s15, 0
    %p136 = por %p134, %p135
    %p137 = scmp.le.s32.totalorder 1, %s9
    %p138 = scmp.lt.s32.totalorder %s9, 3
    %p139 = pnand %p137, %p138
    %p140 = pneg %p139
    // Predicated region
    $region9: #{rope_forward.1} parent=5 // pred_check
      _
    $region10: #{rope_forward.1} parent=5 // pred_check_branch
      %142 = sbr.rel (%p139) target = $region12
    $region11: #{rope_forward.1} parent=5 // pred_region
      %s143 = ssub.s32 %s9, 1
      // Predicated region
      $region13: #{rope_forward.1} parent=11 // pred_check
        %p144 = pneg %p47
      $region14: #{rope_forward.1} parent=11 // pred_check_branch
        %146 = sbr.rel (%p144) target = $region16
      $region15: #{rope_forward.1} parent=11 // pred_region
        %p147 = scmp.lt.s32.totalorder %s18, 0
        %s148 = scalar_select %p147, %s18, 0
        %s149 = smul.addr %s148, 8
        %s150 = scalar_lea.vmem %s0, %s149
      $region16: #{rope_forward.1} parent=11 // pred_fallthru
        _
      // Predicated region
      $region17: #{rope_forward.1} parent=11 // pred_check
        %p151 = pneg %p73
      $region18: #{rope_forward.1} parent=11 // pred_check_branch
        %153 = sbr.rel (%p151) target = $region20
      $region19: #{rope_forward.1} parent=11 // pred_region
        %p154 = scmp.lt.s32.totalorder %s18, 0
        %s155 = scalar_select %p154, %s18, 0
        %s156 = smul.addr %s155, 8
        %s157 = scalar_lea.vmem %s1, %s156
      $region20: #{rope_forward.1} parent=11 // pred_fallthru
        _
    $region12: #{rope_forward.1} parent=5 // pred_fallthru
      _
    %p158 = scmp.lt.s32.totalorder %s9, 2
    // Predicated region
    $region21: #{rope_forward.1} parent=5 // pred_check
      %p159 = pneg %p158
    $region22: #{rope_forward.1} parent=5 // pred_check_branch
      %161 = sbr.rel (%p159) target = $region24
    $region23: #{rope_forward.1} parent=5 // pred_region
      // Predicated region
      $region25: #{rope_forward.1} parent=23 // pred_check
        %p162 = pneg %p95
      $region26: #{rope_forward.1} parent=23 // pred_check_branch
        %164 = sbr.rel (%p162) target = $region28
      $region27: #{rope_forward.1} parent=23 // pred_region
        %s165 = smul.u32 8, %s16
        %p166 = scmp.lt.s32.totalorder %s17, 1
        %s167 = scalar_select %p166, %s17, 1
        %p168 = scmp.lt.s32.totalorder %s165, 7
        %s169 = scalar_select %p168, %s165, 7
        %s170 = smul.addr %s167, 8
        %s171 = sadd.s32 %s169, %s170
        %s172 = scalar_lea.vmem %s2, %s171
        %s173 = smul.u32 8, %s16
      $region28: #{rope_forward.1} parent=23 // pred_fallthru
        _
    $region24: #{rope_forward.1} parent=5 // pred_fallthru
      _
    %p174 = scmp.le.s32.totalorder 1, %s9
    %p175 = scmp.lt.s32.totalorder %s9, 3
    %p176 = pnand %p174, %p175
    %p177 = pneg %p176
    // Predicated region
    $region29: #{rope_forward.1} parent=5 // pred_check
      _
    $region30: #{rope_forward.1} parent=5 // pred_check_branch
      %179 = sbr.rel (%p176) target = $region32
    $region31: #{rope_forward.1} parent=5 // pred_region
      %s180 = ssub.s32 %s9, 1
      %p181 = scmp.lt.s32.totalorder %s18, 0
      %s182 = scalar_select %p181, %s18, 0
      %s183 = smul.addr %s182, 8
      %s184 = scalar_lea.vmem %s0, %s183
      %p185 = pneg %p47
      %p186 = pneg %p44
      %p187 = scmp.lt.s32.totalorder %s18, 0
      %s188 = scalar_select %p187, %s18, 0
      %s189 = smul.addr %s188, 8
      %s190 = scalar_lea.vmem %s1, %s189
      %p191 = pneg %p73
      %p192 = pneg %p70
      %s193 = smul.u32 8, %s18
      %p194 = scmp.lt.s32.totalorder %s19, 1
      %s195 = scalar_select %p194, %s19, 1
      %p196 = scmp.lt.s32.totalorder %s193, 7
      %s197 = scalar_select %p196, %s193, 7
      %s198 = smul.addr %s195, 8
      %s199 = sadd.s32 %s197, %s198
      %s200 = scalar_lea.vmem %s2, %s199
      %p201 = pneg %p101
      %p202 = pneg %p98
      %p203 = pneg %p129
      %p204 = pneg %p126
      %s205 = smul.u32 8, %s18
      %p206 = scmp.lt.s32.totalorder %s19, 1
      %s207 = scalar_select %p206, %s19, 1
      %p208 = scmp.lt.s32.totalorder %s205, 7
      %s209 = scalar_select %p208, %s205, 7
      %s210 = smul.addr %s207, 8
      %s211 = sadd.s32 %s209, %s210
      %s212 = scalar_lea.vmem %s3, %s211
      %p213 = scmp.lt.s32.totalorder %s18, 0
      %s214 = scalar_select %p213, %s18, 0
      %s215 = smul.addr %s214, 8
      %s216 = scalar_lea.vmem %s0, %s215
      %p217 = scmp.lt.s32.totalorder %s18, 0
      %s218 = scalar_select %p217, %s18, 0
      %s219 = smul.addr %s218, 8
      %s220 = scalar_lea.vmem %s1, %s219
      %s221 = smul.u32 8, %s18
      %p222 = scmp.lt.s32.totalorder %s19, 1
      %s223 = scalar_select %p222, %s19, 1
      %p224 = scmp.lt.s32.totalorder %s221, 7
      %s225 = scalar_select %p224, %s221, 7
      %s226 = smul.addr %s223, 8
      %s227 = sadd.s32 %s225, %s226
      %s228 = scalar_lea.vmem %s2, %s227
      %s229 = smul.u32 8, %s18
      %s230 = smul.u32 8, %s18
      %p231 = scmp.lt.s32.totalorder %s19, 1
      %s232 = scalar_select %p231, %s19, 1
      %p233 = scmp.lt.s32.totalorder %s230, 7
      %s234 = scalar_select %p233, %s230, 7
      %s235 = smul.addr %s232, 8
      %s236 = sadd.s32 %s234, %s235
      %s237 = scalar_lea.vmem %s3, %s236
      %s238 = smul.u32 8, %s18
      %v239 = vld [vmem:[%s228] sm:$0x1]
      %v240 = vld [vmem:[%s228 + $0x1] sm:$0x1]
      %v241 = vld [vmem:[%s228 + $0x2] sm:$0x1]
      %v242 = vld [vmem:[%s228 + $0x3] sm:$0x1]
      %v243 = vld [vmem:[%s228 + $0x4] sm:$0x1]
      %v244 = vld [vmem:[%s228 + $0x5] sm:$0x1]
      %v245 = vld [vmem:[%s228 + $0x6] sm:$0x1]
      %v246 = vld [vmem:[%s228 + $0x7] sm:$0x1]
      %247 = vrot.lane.b32.xlu0 %v239, 1
      %v248 = vpop.permute.xlu0 %247
      %249 = vrot.lane.b32.xlu0 %v240, 1
      %v250 = vpop.permute.xlu0 %249
      %251 = vrot.lane.b32.xlu0 %v241, 1
      %v252 = vpop.permute.xlu0 %251
      %253 = vrot.lane.b32.xlu0 %v242, 1
      %v254 = vpop.permute.xlu0 %253
      %255 = vrot.lane.b32.xlu0 %v243, 1
      %v256 = vpop.permute.xlu0 %255
      %257 = vrot.lane.b32.xlu0 %v244, 1
      %v258 = vpop.permute.xlu0 %257
      %259 = vrot.lane.b32.xlu0 %v245, 1
      %v260 = vpop.permute.xlu0 %259
      %261 = vrot.lane.b32.xlu0 %v246, 1
      %v262 = vpop.permute.xlu0 %261
      %263 = vrot.lane.b32.xlu0 %v239, 127
      %v264 = vpop.permute.xlu0 %263
      %265 = vrot.lane.b32.xlu0 %v240, 127
      %v266 = vpop.permute.xlu0 %265
      %267 = vrot.lane.b32.xlu0 %v241, 127
      %v268 = vpop.permute.xlu0 %267
      %269 = vrot.lane.b32.xlu0 %v242, 127
      %v270 = vpop.permute.xlu0 %269
      %271 = vrot.lane.b32.xlu0 %v243, 127
      %v272 = vpop.permute.xlu0 %271
      %273 = vrot.lane.b32.xlu0 %v244, 127
      %v274 = vpop.permute.xlu0 %273
      %275 = vrot.lane.b32.xlu0 %v245, 127
      %v276 = vpop.permute.xlu0 %275
      %277 = vrot.lane.b32.xlu0 %v246, 127
      %v278 = vpop.permute.xlu0 %277
      %v279 = vlaneseq
      %v280 = vand.u32 %v279, 127
      %v281 = vand.u32 %v280, 1
      %vm282 = vcmp.eq.s32.totalorder %v281, 0
      %v283 = vsel %vm282, 1, 0
      %vm284 = vcmp.eq.s32.totalorder %v283, 1
      %v285 = vsel %vm284, %v264, %v248
      %v286 = vsel %vm284, %v266, %v250
      %v287 = vsel %vm284, %v268, %v252
      %v288 = vsel %vm284, %v270, %v254
      %v289 = vsel %vm284, %v272, %v256
      %v290 = vsel %vm284, %v274, %v258
      %v291 = vsel %vm284, %v276, %v260
      %v292 = vsel %vm284, %v278, %v262
      %v293 = vld [vmem:[%s216] sm:$0xff]
      %v295 = vcombine.high %v293, %v293
      %v297 = vunpack.c.l.s4 1966171168
      %v298 = vunpack.c.0.s8 %v297
      %v299 = vlaneseq
      %v300 = vshrl.u32 %v299, 7
      %v301 = vsub.s32 %v298, %v300
      %v302 = vrot.slane %v293, %v301
      %v304 = vunpack.c.l.s4 1966171168
      %v305 = vunpack.c.0.s8 %v304
      %v306 = vlaneseq
      %v307 = vshrl.u32 %v306, 7
      %v308 = vsub.s32 %v305, %v307
      %v309 = vrot.slane %v295, %v308
      %v310 = vcombine.high %v302, %v302
      %v311 = vcombine.high %v309, %v309
      %v313 = vunpack.c.l.s4 1966171168
      %v314 = vunpack.c.0.s8 %v313
      %v315 = vlaneseq
      %v316 = vshrl.u32 %v315, 7
      %v317 = vsub.s32 %v314, %v316
      %v318 = vrot.slane %v302, %v317
      %v320 = vunpack.c.l.s4 1966171168
      %v321 = vunpack.c.0.s8 %v320
      %v322 = vlaneseq
      %v323 = vshrl.u32 %v322, 7
      %v324 = vsub.s32 %v321, %v323
      %v325 = vrot.slane %v309, %v324
      %v327 = vunpack.c.l.s4 1966171168
      %v328 = vunpack.c.0.s8 %v327
      %v329 = vlaneseq
      %v330 = vshrl.u32 %v329, 7
      %v331 = vsub.s32 %v328, %v330
      %v332 = vrot.slane %v310, %v331
      %v334 = vunpack.c.l.s4 1966171168
      %v335 = vunpack.c.0.s8 %v334
      %v336 = vlaneseq
      %v337 = vshrl.u32 %v336, 7
      %v338 = vsub.s32 %v335, %v337
      %v339 = vrot.slane %v311, %v338
      %v340 = vcombine.high %v318, %v318
      %v341 = vcombine.high %v325, %v325
      %v342 = vcombine.high %v332, %v332
      %v343 = vcombine.high %v339, %v339
      %v352 = vld [vmem:[%s220] sm:$0xff]
      %v354 = vcombine.high %v352, %v352
      %v356 = vunpack.c.l.s4 1966171168
      %v357 = vunpack.c.0.s8 %v356
      %v358 = vlaneseq
      %v359 = vshrl.u32 %v358, 7
      %v360 = vsub.s32 %v357, %v359
      %v361 = vrot.slane %v352, %v360
      %v363 = vunpack.c.l.s4 1966171168
      %v364 = vunpack.c.0.s8 %v363
      %v365 = vlaneseq
      %v366 = vshrl.u32 %v365, 7
      %v367 = vsub.s32 %v364, %v366
      %v368 = vrot.slane %v354, %v367
      %v369 = vcombine.high %v361, %v361
      %v370 = vcombine.high %v368, %v368
      %v372 = vunpack.c.l.s4 1966171168
      %v373 = vunpack.c.0.s8 %v372
      %v374 = vlaneseq
      %v375 = vshrl.u32 %v374, 7
      %v376 = vsub.s32 %v373, %v375
      %v377 = vrot.slane %v361, %v376
      %v379 = vunpack.c.l.s4 1966171168
      %v380 = vunpack.c.0.s8 %v379
      %v381 = vlaneseq
      %v382 = vshrl.u32 %v381, 7
      %v383 = vsub.s32 %v380, %v382
      %v384 = vrot.slane %v368, %v383
      %v386 = vunpack.c.l.s4 1966171168
      %v387 = vunpack.c.0.s8 %v386
      %v388 = vlaneseq
      %v389 = vshrl.u32 %v388, 7
      %v390 = vsub.s32 %v387, %v389
      %v391 = vrot.slane %v369, %v390
      %v393 = vunpack.c.l.s4 1966171168
      %v394 = vunpack.c.0.s8 %v393
      %v395 = vlaneseq
      %v396 = vshrl.u32 %v395, 7
      %v397 = vsub.s32 %v394, %v396
      %v398 = vrot.slane %v370, %v397
      %v399 = vcombine.high %v377, %v377
      %v400 = vcombine.high %v384, %v384
      %v401 = vcombine.high %v391, %v391
      %v402 = vcombine.high %v398, %v398
      %v411 = vmul.f32 %v318, %v239
      %v412 = vmul.f32 %v332, %v240
      %v413 = vmul.f32 %v340, %v241
      %v414 = vmul.f32 %v342, %v242
      %v415 = vmul.f32 %v325, %v243
      %v416 = vmul.f32 %v339, %v244
      %v417 = vmul.f32 %v341, %v245
      %v418 = vmul.f32 %v343, %v246
      %v419 = vmul.f32 %v377, %v285
      %v420 = vmul.f32 %v391, %v286
      %v421 = vmul.f32 %v399, %v287
      %v422 = vmul.f32 %v401, %v288
      %v423 = vmul.f32 %v384, %v289
      %v424 = vmul.f32 %v398, %v290
      %v425 = vmul.f32 %v400, %v291
      %v426 = vmul.f32 %v402, %v292
      %v427 = vadd.f32 %v411, %v419
      %v428 = vadd.f32 %v412, %v420
      %v429 = vadd.f32 %v413, %v421
      %v430 = vadd.f32 %v414, %v422
      %v431 = vadd.f32 %v415, %v423
      %v432 = vadd.f32 %v416, %v424
      %v433 = vadd.f32 %v417, %v425
      %v434 = vadd.f32 %v418, %v426
      %435 = vst [vmem:[%s237] sm:$0x1] %v427
      %436 = vst [vmem:[%s237 + $0x1] sm:$0x1] %v428
      %437 = vst [vmem:[%s237 + $0x2] sm:$0x1] %v429
      %438 = vst [vmem:[%s237 + $0x3] sm:$0x1] %v430
      %439 = vst [vmem:[%s237 + $0x4] sm:$0x1] %v431
      %440 = vst [vmem:[%s237 + $0x5] sm:$0x1] %v432
      %441 = vst [vmem:[%s237 + $0x6] sm:$0x1] %v433
      %442 = vst [vmem:[%s237 + $0x7] sm:$0x1] %v434
      %s443 = smul.u32 8, %s18
      %p444 = scmp.lt.s32.totalorder %s19, 1
      %s445 = scalar_select %p444, %s19, 1
      %p446 = scmp.lt.s32.totalorder %s443, 7
      %s447 = scalar_select %p446, %s443, 7
      %s448 = smul.addr %s445, 8
      %s449 = sadd.s32 %s447, %s448
      %s450 = scalar_lea.vmem %s3, %s449
      // Predicated region
      $region33: #{rope_forward.1} parent=31 // pred_check
        %p451 = pneg %p126
      $region34: #{rope_forward.1} parent=31 // pred_check_branch
        %453 = sbr.rel (%p451) target = $region36
      $region35: #{rope_forward.1} parent=31 // pred_region
        %s454 = smul.u32 8, %s18
      $region36: #{rope_forward.1} parent=31 // pred_fallthru
        _
    $region32: #{rope_forward.1} parent=5 // pred_fallthru
      _
    %p455 = scmp.le.s32.totalorder 2, %s9
    // Predicated region
    $region37: #{rope_forward.1} parent=5 // pred_check
      %p456 = pneg %p455
    $region38: #{rope_forward.1} parent=5 // pred_check_branch
      %458 = sbr.rel (%p456) target = $region40
    $region39: #{rope_forward.1} parent=5 // pred_region
      %s459 = ssub.s32 %s9, 2
      // Predicated region
      $region41: #{rope_forward.1} parent=39 // pred_check
        %p460 = pneg %p132
      $region42: #{rope_forward.1} parent=39 // pred_check_branch
        %462 = sbr.rel (%p460) target = $region44
      $region43: #{rope_forward.1} parent=39 // pred_region
        %s463 = smul.u32 8, %s20
        %p464 = scmp.lt.s32.totalorder %s21, 1
        %s465 = scalar_select %p464, %s21, 1
        %p466 = scmp.lt.s32.totalorder %s463, 7
        %s467 = scalar_select %p466, %s463, 7
        %s468 = smul.addr %s465, 8
        %s469 = sadd.s32 %s467, %s468
        %s470 = scalar_lea.vmem %s3, %s469
      $region44: #{rope_forward.1} parent=39 // pred_fallthru
        _
    $region40: #{rope_forward.1} parent=5 // pred_fallthru
      _
  $region6: #{rope_forward.1} parent=0 // loop_footer
    %s13 = sadd.s32 1, %s9
  $region7: #{rope_forward.1} parent=0 // loop_footer_branch
    %8 = sbr.rel target = $region3
  $region8: #{rope_forward.1} parent=0 // loop_exit
    _

</llo_original>
